<compile_context>
chip_gen: v5e
topology: v5e:2x2
jax: 0.10.0
libtpu: 0.0.40
codegen_flags: <defaults>
</compile_context>

<pallas_src>
import math

import jax
import jax.numpy as jnp
from jax.experimental import pallas as pl
from jax.experimental.pallas import tpu as pltpu


_BF16_SUBLANE = 16   # bf16 packs 16 rows per vreg (sublane minimum)
_LANE = 128          # lane width; output lane dim padded to this for unmasked vst


def _round_up(x, m):
    return (x + m - 1) // m * m


# ----------------------------------------------------------------------------
# Pallas kernel: fused 2-layer GCN forward.
# Inputs a/x/w1/w2 are bf16; biases f32; all dots accumulate in f32 on the MXU;
# bias add + ReLU run in f32 on the VPU.
# ----------------------------------------------------------------------------
def gcn_forward_kernel(a_ref, x_ref, w1_ref, b1_ref, w2_ref, b2_ref, o_ref):
    # Layer 1 (reassociated): h = relu((Ahat @ X) @ W1 + b1)
    # aggregation pays N^2*in_c instead of N^2*hidden.
    ax = jnp.dot(a_ref[...], x_ref[...], preferred_element_type=jnp.float32)
    h = jnp.dot(ax.astype(jnp.bfloat16), w1_ref[...],
                preferred_element_type=jnp.float32) + b1_ref[...]
    h = jnp.maximum(h, 0.0)                                   # f32 VPU epilogue

    # Layer 2: out = Ahat @ (h @ W2) + b2
    hw2 = jnp.dot(h.astype(jnp.bfloat16), w2_ref[...],
                  preferred_element_type=jnp.float32)
    out = jnp.dot(a_ref[...], hw2.astype(jnp.bfloat16),
                  preferred_element_type=jnp.float32) + b2_ref[...]

    o_ref[...] = out.astype(o_ref.dtype)                      # lane-dense store


# ----------------------------------------------------------------------------
# One-time parameter preparation (hoisted out of the per-forward hot path).
# Weights -> bf16, lane (output) dims padded to 128; biases stay f32.
# ----------------------------------------------------------------------------
def pad_gcn_params(w1, b1, w2, b2):
    in_c, hid = w1.shape
    out_c = w2.shape[1]
    in_p = _round_up(in_c, _BF16_SUBLANE)      # sublane-only pad (no lane pad)
    hid_p = _round_up(hid, _LANE)
    out_p = _round_up(out_c, _LANE)

    w1_pad = jnp.zeros((in_p, hid_p), jnp.bfloat16).at[:in_c, :hid].set(
        w1.astype(jnp.bfloat16))
    b1_pad = jnp.zeros((1, hid_p), jnp.float32).at[0, :hid].set(
        b1.astype(jnp.float32))
    w2_pad = jnp.zeros((hid_p, out_p), jnp.bfloat16).at[:hid, :out_c].set(
        w2.astype(jnp.bfloat16))
    b2_pad = jnp.zeros((1, out_p), jnp.float32).at[0, :out_c].set(
        b2.astype(jnp.float32))
    return w1_pad, b1_pad, w2_pad, b2_pad


# ----------------------------------------------------------------------------
# Per-call forward.  Pads only Ahat and X (node dim to the bf16 sublane
# minimum), runs the fused kernel, and returns the lane-padded (n_p, 128)
# block -- the consumer views the first (n, out_c) corner.  Zero padding is
# exact: padded columns of Ahat are zero, so real rows of the output are
# unchanged.
# ----------------------------------------------------------------------------
@jax.jit
def gcn_forward(a_hat, x, w1_pad, b1_pad, w2_pad, b2_pad):
    n, in_c = x.shape
    in_p, hid_p = w1_pad.shape
    out_p = w2_pad.shape[1]
    n_p = _round_up(max(n, _BF16_SUBLANE), _BF16_SUBLANE)

    a_pad = jnp.zeros((n_p, n_p), jnp.bfloat16).at[:n, :n].set(
        a_hat.astype(jnp.bfloat16))
    x_pad = jnp.zeros((n_p, in_p), jnp.bfloat16).at[:n, :in_c].set(
        x.astype(jnp.bfloat16))

    flops = 2 * (n_p * n_p * in_p        # Ahat @ X
                 + n_p * in_p * hid_p    # (AX) @ W1
                 + n_p * hid_p * out_p   # h @ W2
                 + n_p * n_p * out_p)    # Ahat @ (hW2)
    bytes_accessed = (
        2 * (a_pad.size + x_pad.size + w1_pad.size + w2_pad.size)   # bf16 in
        + 4 * (b1_pad.size + b2_pad.size)                           # f32 bias
        + 4 * n_p * out_p)                                          # f32 out

    vmem_spec = pl.BlockSpec(memory_space=pltpu.VMEM)
    # TODO(synk): large-N path = one row-tiled pallas_call per GCNConv layer
    # with a reduction grid axis over Ahat column tiles + f32 VMEM accumulator;
    # size tiles per generation (M/N multiples of 256 on v6e/v7x, 128 on v5e;
    # budget <=~48 MiB VMEM on v7x vs ~96 MiB on v5e/v6e), mark the row-tile
    # axis "parallel" so v7x's 2 TensorCores split it, and consider int8 Ahat
    # on v5e/v6e (fp8 on v7x) since the N^2 Ahat stream dominates HBM bytes.
    out_padded = pl.pallas_call(
        gcn_forward_kernel,
        out_shape=jax.ShapeDtypeStruct((n_p, out_p), jnp.float32),
        in_specs=[vmem_spec] * 6,
        out_specs=vmem_spec,
        cost_estimate=pl.CostEstimate(
            flops=flops, transcendentals=0, bytes_accessed=bytes_accessed),
        compiler_params=pltpu.CompilerParams(
            vmem_limit_bytes=16 * 1024 * 1024),
    )(a_pad, x_pad, w1_pad, b1_pad, w2_pad, b2_pad)

    return out_padded


# ----------------------------------------------------------------------------
# Glue: symmetrically-normalized dense adjacency (gcn_norm with self-loops).
# edge_index is [2, E]: row 0 = source, row 1 = target; sum-aggregate at target.
# ----------------------------------------------------------------------------
def build_normalized_adjacency(edge_index, num_nodes):
    src = edge_index[0]
    dst = edge_index[1]
    adj = jnp.zeros((num_nodes, num_nodes), jnp.float32).at[dst, src].add(1.0)
    adj = adj + jnp.eye(num_nodes, dtype=jnp.float32)       # add self-loops
    deg = adj.sum(axis=1)                                    # in-degree (+1)
    d_inv_sqrt = jnp.where(deg > 0, 1.0 / jnp.sqrt(deg), 0.0)
    return d_inv_sqrt[:, None] * adj * d_inv_sqrt[None, :]


def glorot(key, fan_in, fan_out):
    limit = math.sqrt(6.0 / (fan_in + fan_out))
    return jax.random.uniform(
        key, (fan_in, fan_out), jnp.float32, minval=-limit, maxval=limit)


if __name__ == "__main__":
    key = jax.random.PRNGKey(0)
    k_x, k_w1, k_w2 = jax.random.split(key, 3)

    # Small shapes consistent with the module: N selected keyphrase nodes,
    # in_channels = embedding dim, hidden=128, out=64 as in the script.
    num_nodes = 16
    in_channels = 32
    hidden_channels = 128
    out_channels = 64

    # Node features (stand-in for selected sentence embeddings).
    x = jax.random.normal(k_x, (num_nodes, in_channels), jnp.float32)

    # Deterministic small graph: a bidirectional ring plus a few chords.
    idx = jnp.arange(num_nodes)
    ring_src = jnp.concatenate([idx, (idx + 1) % num_nodes])
    ring_dst = jnp.concatenate([(idx + 1) % num_nodes, idx])
    chord_src = jnp.array([0, 5, 3, 10], jnp.int32)
    chord_dst = jnp.array([8, 12, 9, 2], jnp.int32)
    edge_index = jnp.stack(
        [jnp.concatenate([ring_src, chord_src, chord_dst]),
         jnp.concatenate([ring_dst, chord_dst, chord_src])]
    ).astype(jnp.int32)

    a_hat = build_normalized_adjacency(edge_index, num_nodes)

    # Parameters (GCNConv shapes: W [in, out], b [out]).
    w1 = glorot(k_w1, in_channels, hidden_channels)
    b1 = jnp.zeros((hidden_channels,), jnp.float32)
    w2 = glorot(k_w2, hidden_channels, out_channels)
    b2 = jnp.zeros((out_channels,), jnp.float32)

    # Pad/cast weights once (constants across forwards).
    w1_p, b1_p, w2_p, b2_p = pad_gcn_params(w1, b1, w2, b2)

    out_padded = gcn_forward(a_hat, x, w1_p, b1_p, w2_p, b2_p)
    out_padded = jax.block_until_ready(out_padded)

    # Consumer-side view of the real block (rows already exact, cols padded).
    out = out_padded[:num_nodes, :out_channels]
    assert out.shape == (num_nodes, out_channels)

    # Reference with the same bf16 input rounding but f32 math throughout
    # (isolates kernel correctness; tolerance covers the bf16 intermediate
    # casts inside the kernel).
    a_r = a_hat.astype(jnp.bfloat16).astype(jnp.float32)
    x_r = x.astype(jnp.bfloat16).astype(jnp.float32)
    w1_r = w1.astype(jnp.bfloat16).astype(jnp.float32)
    w2_r = w2.astype(jnp.bfloat16).astype(jnp.float32)
    h_ref = jnp.maximum(a_r @ (x_r @ w1_r) + b1[None, :], 0.0)
    out_ref = a_r @ (h_ref @ w2_r) + b2[None, :]
    assert jnp.allclose(out, out_ref, atol=2e-2, rtol=2e-2), (
        float(jnp.max(jnp.abs(out - out_ref))))

    print("KERNEL_OK")
</pallas_src>

<mosaic_0001>
module attributes {stable_mosaic.version = 11 : i64} {
  func.func @gcn_forward_kernel(%arg0: memref<16x16xbf16, #tpu.memory_space<vmem>>, %arg1: memref<16x32xbf16, #tpu.memory_space<vmem>>, %arg2: memref<32x128xbf16, #tpu.memory_space<vmem>>, %arg3: memref<1x128xf32, #tpu.memory_space<vmem>>, %arg4: memref<128x128xbf16, #tpu.memory_space<vmem>>, %arg5: memref<1x128xf32, #tpu.memory_space<vmem>>, %arg6: memref<16x128xf32, #tpu.memory_space<vmem>>) attributes {dimension_semantics = [], scalar_prefetch = 0 : i64, scratch_operands = 0 : i64, tpu.core_type = #tpu.core_type<tc>} {
    %c0 = arith.constant 0 : index
    %c0_0 = arith.constant 0 : index
    %0 = vector.load %arg0[%c0, %c0_0] : memref<16x16xbf16, #tpu.memory_space<vmem>>, vector<16x16xbf16>
    %c0_1 = arith.constant 0 : index
    %c0_2 = arith.constant 0 : index
    %1 = vector.load %arg1[%c0_1, %c0_2] : memref<16x32xbf16, #tpu.memory_space<vmem>>, vector<16x32xbf16>
    %cst = arith.constant dense<0.000000e+00> : vector<16x32xf32>
    %2 = tpu.matmul %0, %1, %cst {dimension_numbers = #tpu.dot_dimension_numbers<[1], [0], [0], [1], [0, 0, 1, 1], [], []>} : vector<16x16xbf16>, vector<16x32xbf16>, vector<16x32xf32> -> vector<16x32xf32>
    %3 = arith.truncf %2 : vector<16x32xf32> to vector<16x32xbf16>
    %c0_3 = arith.constant 0 : index
    %c0_4 = arith.constant 0 : index
    %4 = vector.load %arg2[%c0_3, %c0_4] : memref<32x128xbf16, #tpu.memory_space<vmem>>, vector<32x128xbf16>
    %cst_5 = arith.constant dense<0.000000e+00> : vector<16x128xf32>
    %5 = tpu.matmul %3, %4, %cst_5 {dimension_numbers = #tpu.dot_dimension_numbers<[1], [0], [0], [1], [0, 0, 1, 1], [], []>} : vector<16x32xbf16>, vector<32x128xbf16>, vector<16x128xf32> -> vector<16x128xf32>
    %c0_6 = arith.constant 0 : index
    %c0_7 = arith.constant 0 : index
    %6 = vector.load %arg3[%c0_6, %c0_7] : memref<1x128xf32, #tpu.memory_space<vmem>>, vector<1x128xf32>
    %7 = vector.broadcast %6 : vector<1x128xf32> to vector<16x128xf32>
    %8 = arith.addf %5, %7 : vector<16x128xf32>
    %cst_8 = arith.constant 0.000000e+00 : f32
    %9 = vector.broadcast %cst_8 : f32 to vector<16x128xf32>
    %10 = arith.maximumf %8, %9 : vector<16x128xf32>
    %11 = arith.truncf %10 : vector<16x128xf32> to vector<16x128xbf16>
    %c0_9 = arith.constant 0 : index
    %c0_10 = arith.constant 0 : index
    %12 = vector.load %arg4[%c0_9, %c0_10] : memref<128x128xbf16, #tpu.memory_space<vmem>>, vector<128x128xbf16>
    %cst_11 = arith.constant dense<0.000000e+00> : vector<16x128xf32>
    %13 = tpu.matmul %11, %12, %cst_11 {dimension_numbers = #tpu.dot_dimension_numbers<[1], [0], [0], [1], [0, 0, 1, 1], [], []>} : vector<16x128xbf16>, vector<128x128xbf16>, vector<16x128xf32> -> vector<16x128xf32>
    %c0_12 = arith.constant 0 : index
    %c0_13 = arith.constant 0 : index
    %14 = vector.load %arg0[%c0_12, %c0_13] : memref<16x16xbf16, #tpu.memory_space<vmem>>, vector<16x16xbf16>
    %15 = arith.truncf %13 : vector<16x128xf32> to vector<16x128xbf16>
    %cst_14 = arith.constant dense<0.000000e+00> : vector<16x128xf32>
    %16 = tpu.matmul %14, %15, %cst_14 {dimension_numbers = #tpu.dot_dimension_numbers<[1], [0], [0], [1], [0, 0, 1, 1], [], []>} : vector<16x16xbf16>, vector<16x128xbf16>, vector<16x128xf32> -> vector<16x128xf32>
    %c0_15 = arith.constant 0 : index
    %c0_16 = arith.constant 0 : index
    %17 = vector.load %arg5[%c0_15, %c0_16] : memref<1x128xf32, #tpu.memory_space<vmem>>, vector<1x128xf32>
    %18 = vector.broadcast %17 : vector<1x128xf32> to vector<16x128xf32>
    %19 = arith.addf %16, %18 : vector<16x128xf32>
    %c0_17 = arith.constant 0 : index
    %c0_18 = arith.constant 0 : index
    %20 = vector.load %arg6[%c0_17, %c0_18] : memref<16x128xf32, #tpu.memory_space<vmem>>, vector<16x128xf32>
    tpu.vector_store %arg6[%c0_17, %c0_18], %19 {strides = array<i32>} : memref<16x128xf32, #tpu.memory_space<vmem>>, vector<16x128xf32>,
    return
  }
}

</mosaic_0001>

<llo_original>
// kernel: gcn_forward.1
$region0: #{gcn_forward.1}
  #allocation0 [shape = 'u32[]', space=smem, size = 0x4, offset = 0x4, fixed_abs, tag = 'smem constant byte address 0x4 - core index']
  #allocation1 [shape = 'u32[72,128]{1,0:T(1,128)}', space=vmem, size = 0x9000, scoped, tag = 'internal scratch']
  %s0 = inlined_call_operand.vmem [shape: bf16[16,16], index: 0, kind: input, shape index: {}]
  %s1 = inlined_call_operand.vmem [shape: bf16[16,32], index: 1, kind: input, shape index: {}]
  %s2 = inlined_call_operand.vmem [shape: bf16[32,128], index: 2, kind: input, shape index: {}]
  %s3 = inlined_call_operand.vmem [shape: f32[1,128], index: 3, kind: input, shape index: {}]
  %s4 = inlined_call_operand.hbm [shape: bf16[128,128], index: 4, kind: input, shape index: {}]
  %s5 = inlined_call_operand.vmem [shape: f32[1,128], index: 5, kind: input, shape index: {}]
  %s6 = inlined_call_operand.hbm [shape: f32[16,128], index: 6, kind: output, shape index: {}]
  %s7 = sld [smem:[#allocation0]]
  $region38: #{gcn_forward.1} parent=0
    _
  %s9 = ssub.s32 1, %s7
  %s10 = scalar_select 0, %s9, %s7
  $region1: #{gcn_forward.1} parent=0
    #allocation2 [shape = 'u8[32768]{0}', space=vmem, size = 0x8000, scoped, tag = 'input window, operand 4, single buffered']
    #allocation3 [shape = 's32[1]{0}', space=sflag, size = 0x4, scoped, tag = 'scoped memory for gcn_forward.1']
    #allocation4 [shape = 's32[1]{0}', space=sflag, size = 0x4, scoped, tag = 'scoped memory for gcn_forward.1']
    #allocation5 [shape = 'u8[8192]{0}', space=vmem, size = 0x2000, scoped, tag = 'output window, operand 0, single buffered']
    %11 = vsyncpa [#allocation3], 0
    %12 = vsyncpa [#allocation4], 0
    // Predicated region
    $region2: #{gcn_forward.1} parent=1 // pred_check
      _
    $region3: #{gcn_forward.1} parent=1 // pred_check_branch
      %14 = sbr.rel (0) target = $region5
    $region4: #{gcn_forward.1} parent=1 // pred_region
      _
    $region5: #{gcn_forward.1} parent=1 // pred_fallthru
      _
    // Predicated region
    $region6: #{gcn_forward.1} parent=1 // pred_check
      _
    $region7: #{gcn_forward.1} parent=1 // pred_check_branch
      %16 = sbr.rel (0) target = $region9
    $region8: #{gcn_forward.1} parent=1 // pred_region
      _
    $region9: #{gcn_forward.1} parent=1 // pred_fallthru
      _
    // Predicated region
    $region10: #{gcn_forward.1} parent=1 // pred_check
      _
    $region11: #{gcn_forward.1} parent=1 // pred_check_branch
      %18 = sbr.rel (0) target = $region13
    $region12: #{gcn_forward.1} parent=1 // pred_region
      _
    $region13: #{gcn_forward.1} parent=1 // pred_fallthru
      _
    // Predicated region
    $region14: #{gcn_forward.1} parent=1 // pred_check
      _
    $region15: #{gcn_forward.1} parent=1 // pred_check_branch
      %20 = sbr.rel (0) target = $region17
    $region16: #{gcn_forward.1} parent=1 // pred_region
      _
    $region17: #{gcn_forward.1} parent=1 // pred_fallthru
      _
    // Predicated region
    $region18: #{gcn_forward.1} parent=1 // pred_check
      _
    $region19: #{gcn_forward.1} parent=1 // pred_check_branch
      %22 = sbr.rel (0) target = $region21
    $region20: #{gcn_forward.1} parent=1 // pred_region
      %24 = vsyncadd [#allocation3], 0
      %s25 = sshll.u32 %s4, 4
      %s26 = int_to_ptr.hbm [resolvable:$true] %s25
      %s27 = sshll.u32 [#allocation2], 4
      %s28 = int_to_ptr.vmem [resolvable:$true] %s27
      %33 = dma.hbm_to_vmem [thread:$0]  %s26, 1024, %s28, [#allocation3], 64, 64, 4
    $region21: #{gcn_forward.1} parent=1 // pred_fallthru
      _
    // Predicated region
    $region22: #{gcn_forward.1} parent=1 // pred_check
      _
    $region23: #{gcn_forward.1} parent=1 // pred_check_branch
      %35 = sbr.rel (0) target = $region25
    $region24: #{gcn_forward.1} parent=1 // pred_region
      _
    $region25: #{gcn_forward.1} parent=1 // pred_fallthru
      _
    // Predicated region
    $region26: #{gcn_forward.1} parent=1 // pred_check
      _
    $region27: #{gcn_forward.1} parent=1 // pred_check_branch
      %37 = sbr.rel (0) target = $region29
    $region28: #{gcn_forward.1} parent=1 // pred_region
      %39 = dma.done [#allocation3], 1024
    $region29: #{gcn_forward.1} parent=1 // pred_fallthru
      _
    %v41 = vld [vmem:[%s0] sm:$0xf]
    %v42 = vld [vmem:[%s0 + $0x4] sm:$0xf]
    %v43 = vld [vmem:[%s1] sm:$0xf]
    %v44 = vld [vmem:[%s1 + $0x4] sm:$0xf]
    %v47 = vunpack.c.l.b16 %v41
    %v48 = vunpack.c.l.b16 %v42
    %v49 = vpack.c.b16 %v48, %v47
    %v52 = vunpack.c.l.b16 %v43
    %v53 = vunpack.c.l.b16 %v44
    %v54 = vpack.c.b16 %v53, %v52
    %vm56 = vcmask 130048
    %v58 = vsel %vm56, %v49, 0
    %60 = vmatpush.bf16.msra.mxu0 0
    %61 = vmatpush.bf16.msra.mxu0 0
    %62 = vmatpush.bf16.msra.mxu0 0
    %63 = vmatpush.bf16.msra.mxu0 0
    %64 = vmatpush.bf16.msra.mxu0 0
    %65 = vmatpush.bf16.msra.mxu0 0
    %66 = vmatpush.bf16.msra.mxu0 0
    %67 = vmatpush.bf16.msra.mxu0 %v54
    %68 = vmatmul.bf16.gmra.mxu0 %v58
    %v69 = vpop.f32.mrf.mxu0
    %v70 = vadd.f32 0.0, %v69
    %v71 = vpop.f32.mrf.mxu0
    %v72 = vadd.f32 0.0, %v71
    %73 = vdwg.mxu0
    %v74 = vpack.c.bf16 %v72, %v70
    %v75 = vld [vmem:[%s2] sm:$0xf]
    %v76 = vld [vmem:[%s2 + $0x4] sm:$0xf]
    %v77 = vld [vmem:[%s2 + $0x8] sm:$0xf]
    %v78 = vld [vmem:[%s2 + $0xc] sm:$0xf]
    %v79 = vld [vmem:[%s3] sm:$0x1]
    %v81 = vperm.slane %v79, 0
    %v87 = vunpack.c.l.b16 %v75
    %v88 = vunpack.c.l.b16 %v76
    %v89 = vunpack.c.l.b16 %v77
    %v90 = vunpack.c.l.b16 %v78
    %v91 = vpack.c.b16 %v88, %v87
    %v92 = vpack.c.b16 %v90, %v89
    %vm95 = vcmask 261120
    %v97 = vsel %vm95, %v74, 0
    %99 = vmatpush.bf16.msra.mxu0 0
    %100 = vmatpush.bf16.msra.mxu0 0
    %101 = vmatpush.bf16.msra.mxu0 0
    %102 = vmatpush.bf16.msra.mxu0 0
    %103 = vmatpush.bf16.msra.mxu0 0
    %104 = vmatpush.bf16.msra.mxu0 0
    %105 = vmatpush.bf16.msra.mxu0 %v92
    %106 = vmatpush.bf16.msra.mxu0 %v91
    %107 = vmatmul.bf16.gmra.mxu0 %v97
    %v108 = vpop.f32.mrf.mxu0
    %v109 = vadd.f32 %v81, %v108
    %v110 = vpop.f32.mrf.mxu0
    %v111 = vadd.f32 %v81, %v110
    %112 = vdwg.mxu0
    %v113 = vmax.f32 %v109, 0.0
    %v114 = vmax.f32 %v111, 0.0
    %v115 = vpack.c.bf16 %v114, %v113
    %v116 = vld [vmem:[#allocation2] sm:$0xf]
    %v117 = vld [vmem:[#allocation2 + $0x4] sm:$0xf]
    %v118 = vld [vmem:[#allocation2 + $0x8] sm:$0xf]
    %v119 = vld [vmem:[#allocation2 + $0xc] sm:$0xf]
    %v120 = vld [vmem:[#allocation2 + $0x10] sm:$0xf]
    %v121 = vld [vmem:[#allocation2 + $0x14] sm:$0xf]
    %v122 = vld [vmem:[#allocation2 + $0x18] sm:$0xf]
    %v123 = vld [vmem:[#allocation2 + $0x1c] sm:$0xf]
    %v124 = vld [vmem:[#allocation2 + $0x20] sm:$0xf]
    %v125 = vld [vmem:[#allocation2 + $0x24] sm:$0xf]
    %v126 = vld [vmem:[#allocation2 + $0x28] sm:$0xf]
    %v127 = vld [vmem:[#allocation2 + $0x2c] sm:$0xf]
    %v128 = vld [vmem:[#allocation2 + $0x30] sm:$0xf]
    %v129 = vld [vmem:[#allocation2 + $0x34] sm:$0xf]
    %v130 = vld [vmem:[#allocation2 + $0x38] sm:$0xf]
    %v131 = vld [vmem:[#allocation2 + $0x3c] sm:$0xf]
    %v148 = vunpack.c.l.b16 %v116
    %v149 = vunpack.c.l.b16 %v117
    %v150 = vunpack.c.l.b16 %v118
    %v151 = vunpack.c.l.b16 %v119
    %v152 = vunpack.c.l.b16 %v120
    %v153 = vunpack.c.l.b16 %v121
    %v154 = vunpack.c.l.b16 %v122
    %v155 = vunpack.c.l.b16 %v123
    %v156 = vunpack.c.l.b16 %v124
    %v157 = vunpack.c.l.b16 %v125
    %v158 = vunpack.c.l.b16 %v126
    %v159 = vunpack.c.l.b16 %v127
    %v160 = vunpack.c.l.b16 %v128
    %v161 = vunpack.c.l.b16 %v129
    %v162 = vunpack.c.l.b16 %v130
    %v163 = vunpack.c.l.b16 %v131
    %v164 = vpack.c.b16 %v149, %v148
    %v165 = vpack.c.b16 %v151, %v150
    %v166 = vpack.c.b16 %v153, %v152
    %v167 = vpack.c.b16 %v155, %v154
    %v168 = vpack.c.b16 %v157, %v156
    %v169 = vpack.c.b16 %v159, %v158
    %v170 = vpack.c.b16 %v161, %v160
    %v171 = vpack.c.b16 %v163, %v162
    %180 = vmatpush.bf16.msra.mxu0 %v171
    %181 = vmatpush.bf16.msra.mxu0 %v170
    %182 = vmatpush.bf16.msra.mxu0 %v169
    %183 = vmatpush.bf16.msra.mxu0 %v168
    %184 = vmatpush.bf16.msra.mxu0 %v167
    %185 = vmatpush.bf16.msra.mxu0 %v166
    %186 = vmatpush.bf16.msra.mxu0 %v165
    %187 = vmatpush.bf16.msra.mxu0 %v164
    %188 = vmatmul.bf16.gmra.mxu0 %v115
    %v189 = vpop.f32.mrf.mxu0
    %v190 = vadd.f32 0.0, %v189
    %v191 = vpop.f32.mrf.mxu0
    %v192 = vadd.f32 0.0, %v191
    %193 = vdwg.mxu0
    %v194 = vpack.c.bf16 %v192, %v190
    %v195 = vld [vmem:[%s5] sm:$0x1]
    %v197 = vperm.slane %v195, 0
    %199 = vmatpush.bf16.msra.mxu0 0
    %200 = vmatpush.bf16.msra.mxu0 0
    %201 = vmatpush.bf16.msra.mxu0 0
    %202 = vmatpush.bf16.msra.mxu0 0
    %203 = vmatpush.bf16.msra.mxu0 0
    %204 = vmatpush.bf16.msra.mxu0 0
    %205 = vmatpush.bf16.msra.mxu0 0
    %206 = vmatpush.bf16.msra.mxu0 %v194
    %207 = vmatmul.bf16.gmra.mxu0 %v58
    %v208 = vpop.f32.mrf.mxu0
    %v209 = vadd.f32 %v197, %v208
    %v210 = vpop.f32.mrf.mxu0
    %v211 = vadd.f32 %v197, %v210
    %212 = vdwg.mxu0
    %213 = vst [vmem:[#allocation5] sm:$0xff] %v209
    %214 = vst [vmem:[#allocation5 + $0x8] sm:$0xff] %v211
    // Predicated region
    $region30: #{gcn_forward.1} parent=1 // pred_check
      _
    $region31: #{gcn_forward.1} parent=1 // pred_check_branch
      %216 = sbr.rel (0) target = $region33
    $region32: #{gcn_forward.1} parent=1 // pred_region
      %218 = vsyncadd [#allocation4], 0
      %s219 = sshll.u32 [#allocation5], 4
      %s220 = int_to_ptr.vmem [resolvable:$true] %s219
      %s221 = sshll.u32 %s6, 4
      %s222 = int_to_ptr.hbm [resolvable:$true] %s221
      %227 = dma.vmem_to_hbm [thread:$0]  %s220, 256, %s222, [#allocation4], 128, 128, 8
    $region33: #{gcn_forward.1} parent=1 // pred_fallthru
      _
    // Predicated region
    $region34: #{gcn_forward.1} parent=1 // pred_check
      _
    $region35: #{gcn_forward.1} parent=1 // pred_check_branch
      %229 = sbr.rel (0) target = $region37
    $region36: #{gcn_forward.1} parent=1 // pred_region
      %231 = dma.done [#allocation4], 256
    $region37: #{gcn_forward.1} parent=1 // pred_fallthru
      _
    %232 = vsyncpa [#allocation3], 1
    %233 = vsyncpa [#allocation4], 1

</llo_original>
